<compile_context>
chip_gen: v6e
topology: v6e:2x2x1
jax: 0.10.0
libtpu: 0.0.40
codegen_flags: <defaults>
</compile_context>

<pallas_src>
import jax
import jax.numpy as jnp
from jax import lax
from jax.experimental import pallas as pl
from jax.experimental.pallas import tpu as pltpu

SQRT2 = 1.4142135623730951
PACK = 4  # original rows packed per lane-dense row (4 * Cin=32 -> 128 lanes)


def _round_up(x, m):
    return ((x + m - 1) // m) * m


def _block_diag(w, p):
    """(a, b) -> (p*a, p*b) block-diagonal replication of w (exact copies)."""
    a, b = w.shape
    eye = jnp.eye(p, dtype=w.dtype)
    return (eye[:, None, :, None] * w[None, :, None, :]).reshape(p * a, p * b)


def _mlp_kernel(x_ref, w1_ref, b1_ref, w2_ref, b2_ref, o_ref):
    # fc1 on packed rows: (tmp, P*Cin) @ (P*Cin, P*H), f32 accumulate on MXU.
    h = jnp.dot(x_ref[...], w1_ref[...], preferred_element_type=jnp.float32)
    h = h + b1_ref[...]                       # biases already f32
    # Exact erf GELU (PyTorch nn.GELU default) in f32 over the lane-dense slab.
    h = 0.5 * h * (1.0 + lax.erf(h * (1.0 / SQRT2)))
    # fc2: cast back to the weight dtype for the MXU, accumulate in f32.
    o = jnp.dot(h.astype(w2_ref.dtype), w2_ref[...],
                preferred_element_type=jnp.float32)
    o = o + b2_ref[...]
    # Lane-dense (tmp, P*Cout) store -> unmasked full-lane vst.
    o_ref[...] = o.astype(o_ref.dtype)


def mlp_pallas(x, w1, b1, w2, b2, *, tm=4096):
    """x: [B, N, Cin]; w1: [Cin, H]; b1: [H]; w2: [H, Cout]; b2: [Cout].

    tm = original rows per grid step (~4096-8192 on v6e, ~2048-4096 on v5e).
    """
    B, N, Cin = x.shape
    H = w1.shape[1]
    Cout = w2.shape[1]
    M = B * N
    P = PACK

    # Lane packing: P original rows per packed row.  For the 32/64/32 Mlp the
    # packed widths are 128 / 256 / 128, i.e. fully lane-dense.
    w1_blk = _block_diag(w1, P)                        # (P*Cin, P*H)
    w2_blk = _block_diag(w2, P)                        # (P*H,  P*Cout)
    b1_f = jnp.tile(b1.astype(jnp.float32), P).reshape(1, P * H)
    b2_f = jnp.tile(b2.astype(jnp.float32), P).reshape(1, P * Cout)

    # Pad rows only to the pack*sublane multiple (<= 63 extra rows); 16 rows
    # covers both f32 (8) and bf16 packed (16) sublanes.  Never pad to a full
    # tile multiple -- ragged last grid blocks are handled by Pallas (OOB
    # reads compute garbage that is never written past Mp).
    align = P * 16
    M_pad = _round_up(M, align)
    x2 = x.reshape(M, Cin)
    if M_pad != M:
        x2 = jnp.pad(x2, ((0, M_pad - M), (0, 0)))
    Mp = M_pad // P                                    # packed row count
    xp = x2.reshape(Mp, P * Cin)                       # free contiguous view

    # Packed-row tile: ~tm original rows per step, capped so the grid keeps at
    # least 2 steps when there is enough work (two-TensorCore sharding).
    tmp = min(Mp, max(16, _round_up(min(tm // P, pl.cdiv(Mp, 2)), 16)))
    grid = (pl.cdiv(Mp, tmp),)

    out2 = pl.pallas_call(
        _mlp_kernel,
        out_shape=jax.ShapeDtypeStruct((Mp, P * Cout), x.dtype),
        grid_spec=pl.GridSpec(
            grid=grid,
            in_specs=[
                pl.BlockSpec((tmp, P * Cin), lambda i: (i, 0)),     # packed x
                pl.BlockSpec((P * Cin, P * H), lambda i: (0, 0)),   # w1 (resident)
                pl.BlockSpec((1, P * H), lambda i: (0, 0)),         # b1 (f32)
                pl.BlockSpec((P * H, P * Cout), lambda i: (0, 0)),  # w2 (resident)
                pl.BlockSpec((1, P * Cout), lambda i: (0, 0)),      # b2 (f32)
            ],
            out_specs=pl.BlockSpec((tmp, P * Cout), lambda i: (i, 0)),
        ),
        compiler_params=pltpu.CompilerParams(
            dimension_semantics=("parallel",),
            vmem_limit_bytes=32 * 1024 * 1024),
    )(xp, w1_blk, b1_f, w2_blk, b2_f)

    out = out2.reshape(M_pad, Cout)                    # unpack rows (free view)
    if M_pad != M:
        out = out[:M]
    return out.reshape(B, N, Cout)


def mlp_reference(x, w1, b1, w2, b2):
    h = jnp.einsum("bnc,ch->bnh", x.astype(jnp.float32),
                   w1.astype(jnp.float32)) + b1.astype(jnp.float32)
    h = 0.5 * h * (1.0 + lax.erf(h / SQRT2))
    o = jnp.einsum("bnh,ho->bno", h, w2.astype(jnp.float32))
    return o + b2.astype(jnp.float32)


if __name__ == "__main__":
    # Shapes consistent with a transformer-style Mlp:
    # in_features=32, hidden_features=64, out_features defaults to in_features.
    B, N, Cin, H = 2, 8, 32, 64
    Cout = Cin

    key = jax.random.PRNGKey(0)
    kx, k1, k2, k3, k4 = jax.random.split(key, 5)

    x = jax.random.normal(kx, (B, N, Cin), dtype=jnp.float32)
    # Deterministic "linear-layer" parameters (synthetic, not a checkpoint).
    w1 = jax.random.normal(k1, (Cin, H), dtype=jnp.float32) * 0.05
    b1 = jax.random.normal(k2, (H,), dtype=jnp.float32) * 0.01
    w2 = jax.random.normal(k3, (H, Cout), dtype=jnp.float32) * 0.05
    b2 = jax.random.normal(k4, (Cout,), dtype=jnp.float32) * 0.01

    # TODO(synk): nn.Dropout(drop=0.0) is the identity at inference; no kernel
    # RNG path is needed.  For drop>0 one would use pltpu.prng_* in-kernel.

    # --- f32 path (small, exercises the pad-to-64-rows path) ---
    out = jax.block_until_ready(mlp_pallas(x, w1, b1, w2, b2))
    ref = mlp_reference(x, w1, b1, w2, b2)
    assert out.shape == (B, N, Cout)
    assert jnp.allclose(out, ref, atol=1e-5, rtol=1e-5)

    # --- ragged row count (M not a multiple of the packing alignment) ---
    x_odd = jax.random.normal(kx, (B, N + 1, Cin), dtype=jnp.float32)
    out_odd = jax.block_until_ready(mlp_pallas(x_odd, w1, b1, w2, b2))
    ref_odd = mlp_reference(x_odd, w1, b1, w2, b2)
    assert out_odd.shape == (B, N + 1, Cout)
    assert jnp.allclose(out_odd, ref_odd, atol=1e-5, rtol=1e-5)

    # --- bf16 path (halves bytes moved; f32 accumulate + f32 GELU inside) ---
    out_bf16 = jax.block_until_ready(
        mlp_pallas(x.astype(jnp.bfloat16), w1.astype(jnp.bfloat16),
                   b1.astype(jnp.bfloat16), w2.astype(jnp.bfloat16),
                   b2.astype(jnp.bfloat16)))
    assert jnp.allclose(out_bf16.astype(jnp.float32), ref,
                        atol=5e-2, rtol=5e-2)

    # --- larger aligned case: no wrapper copies, multi-step parallel grid ---
    x_big = jax.random.normal(kx, (2, 2048, Cin), dtype=jnp.float32)
    out_big = jax.block_until_ready(mlp_pallas(x_big, w1, b1, w2, b2))
    ref_big = mlp_reference(x_big, w1, b1, w2, b2)
    assert out_big.shape == (2, 2048, Cout)
    assert jnp.allclose(out_big, ref_big, atol=1e-4, rtol=1e-4)

    print("KERNEL_OK")
</pallas_src>

<mosaic_0001>
module attributes {stable_mosaic.version = 11 : i64} {
  func.func @_mlp_kernel(%arg0: i32, %arg1: memref<16x128xf32, #tpu.memory_space<vmem>>, %arg2: memref<128x256xf32, #tpu.memory_space<vmem>>, %arg3: memref<1x256xf32, #tpu.memory_space<vmem>>, %arg4: memref<256x128xf32, #tpu.memory_space<vmem>>, %arg5: memref<1x128xf32, #tpu.memory_space<vmem>>, %arg6: memref<16x128xf32, #tpu.memory_space<vmem>>) attributes {dimension_semantics = [#tpu.dimension_semantics<parallel>], iteration_bounds = array<i64: 1>, scalar_prefetch = 0 : i64, scratch_operands = 0 : i64, tpu.core_type = #tpu.core_type<tc>, window_params = [{transform_indices = @transform_0, window_bounds = array<i64: 16, 128>}, {pipeline_mode = #tpu.pipeline_mode<synchronous>, transform_indices = @transform_1, window_bounds = array<i64: 128, 256>}, {pipeline_mode = #tpu.pipeline_mode<synchronous>, transform_indices = @transform_2, window_bounds = array<i64: 1, 256>}, {pipeline_mode = #tpu.pipeline_mode<synchronous>, transform_indices = @transform_3, window_bounds = array<i64: 256, 128>}, {pipeline_mode = #tpu.pipeline_mode<synchronous>, transform_indices = @transform_4, window_bounds = array<i64: 1, 128>}, {transform_indices = @transform_5, window_bounds = array<i64: 16, 128>}]} {
    %c0 = arith.constant 0 : index
    %c0_0 = arith.constant 0 : index
    %0 = vector.load %arg1[%c0, %c0_0] : memref<16x128xf32, #tpu.memory_space<vmem>>, vector<16x128xf32>
    %c0_1 = arith.constant 0 : index
    %c0_2 = arith.constant 0 : index
    %1 = vector.load %arg2[%c0_1, %c0_2] : memref<128x256xf32, #tpu.memory_space<vmem>>, vector<128x256xf32>
    %cst = arith.constant dense<0.000000e+00> : vector<16x256xf32>
    %2 = tpu.matmul %0, %1, %cst {dimension_numbers = #tpu.dot_dimension_numbers<[1], [0], [0], [1], [0, 0, 1, 1], [], []>} : vector<16x128xf32>, vector<128x256xf32>, vector<16x256xf32> -> vector<16x256xf32>
    %c0_3 = arith.constant 0 : index
    %c0_4 = arith.constant 0 : index
    %3 = vector.load %arg3[%c0_3, %c0_4] : memref<1x256xf32, #tpu.memory_space<vmem>>, vector<1x256xf32>
    %4 = vector.broadcast %3 : vector<1x256xf32> to vector<16x256xf32>
    %5 = arith.addf %2, %4 : vector<16x256xf32>
    %cst_5 = arith.constant 5.000000e-01 : f32
    %6 = vector.broadcast %cst_5 : f32 to vector<16x256xf32>
    %7 = arith.mulf %6, %5 : vector<16x256xf32>
    %cst_6 = arith.constant 0.707106769 : f32
    %8 = vector.broadcast %cst_6 : f32 to vector<16x256xf32>
    %9 = arith.mulf %5, %8 : vector<16x256xf32>
    %10 = math.erf %9 : vector<16x256xf32>
    %cst_7 = arith.constant 1.000000e+00 : f32
    %11 = vector.broadcast %cst_7 : f32 to vector<16x256xf32>
    %12 = arith.addf %11, %10 : vector<16x256xf32>
    %13 = arith.mulf %7, %12 : vector<16x256xf32>
    %c0_8 = arith.constant 0 : index
    %c0_9 = arith.constant 0 : index
    %14 = vector.load %arg4[%c0_8, %c0_9] : memref<256x128xf32, #tpu.memory_space<vmem>>, vector<256x128xf32>
    %cst_10 = arith.constant dense<0.000000e+00> : vector<16x128xf32>
    %15 = tpu.matmul %13, %14, %cst_10 {dimension_numbers = #tpu.dot_dimension_numbers<[1], [0], [0], [1], [0, 0, 1, 1], [], []>} : vector<16x256xf32>, vector<256x128xf32>, vector<16x128xf32> -> vector<16x128xf32>
    %c0_11 = arith.constant 0 : index
    %c0_12 = arith.constant 0 : index
    %16 = vector.load %arg5[%c0_11, %c0_12] : memref<1x128xf32, #tpu.memory_space<vmem>>, vector<1x128xf32>
    %17 = vector.broadcast %16 : vector<1x128xf32> to vector<16x128xf32>
    %18 = arith.addf %15, %17 : vector<16x128xf32>
    %c0_13 = arith.constant 0 : index
    %c0_14 = arith.constant 0 : index
    %19 = vector.load %arg6[%c0_13, %c0_14] : memref<16x128xf32, #tpu.memory_space<vmem>>, vector<16x128xf32>
    tpu.vector_store %arg6[%c0_13, %c0_14], %18 {strides = array<i32>} : memref<16x128xf32, #tpu.memory_space<vmem>>, vector<16x128xf32>,
    return
  }
  func.func @transform_0(%arg0: i32) -> (i32, i32) {
    %c0_i32 = arith.constant 0 : i32
    %c0_i32_0 = arith.constant 0 : i32
    return %arg0, %c0_i32 : i32, i32
  }
  func.func @transform_1(%arg0: i32) -> (i32, i32) {
    %c0_i32 = arith.constant 0 : i32
    %c0_i32_0 = arith.constant 0 : i32
    %c0_i32_1 = arith.constant 0 : i32
    return %c0_i32, %c0_i32_0 : i32, i32
  }
  func.func @transform_2(%arg0: i32) -> (i32, i32) {
    %c0_i32 = arith.constant 0 : i32
    %c0_i32_0 = arith.constant 0 : i32
    %c0_i32_1 = arith.constant 0 : i32
    return %c0_i32, %c0_i32_0 : i32, i32
  }
  func.func @transform_3(%arg0: i32) -> (i32, i32) {
    %c0_i32 = arith.constant 0 : i32
    %c0_i32_0 = arith.constant 0 : i32
    %c0_i32_1 = arith.constant 0 : i32
    return %c0_i32, %c0_i32_0 : i32, i32
  }
  func.func @transform_4(%arg0: i32) -> (i32, i32) {
    %c0_i32 = arith.constant 0 : i32
    %c0_i32_0 = arith.constant 0 : i32
    %c0_i32_1 = arith.constant 0 : i32
    return %c0_i32, %c0_i32_0 : i32, i32
  }
  func.func @transform_5(%arg0: i32) -> (i32, i32) {
    %c0_i32 = arith.constant 0 : i32
    %c0_i32_0 = arith.constant 0 : i32
    return %arg0, %c0_i32 : i32, i32
  }
}

</mosaic_0001>

<llo_original>
// kernel: tpu_custom_call.1
$region0: #{tpu_custom_call.1}
  #allocation0 [shape = 'u32[]', space=smem, size = 0x4, offset = 0x4, fixed_abs, tag = 'smem constant byte address 0x4 - core index']
  #allocation1 [shape = 'u32[144,128]{1,0:T(1,128)}', space=vmem, size = 0x12000, scoped, tag = 'internal scratch']
  %s0 = inlined_call_operand.hbm [shape: f32[16,128], index: 0, kind: input, shape index: {}]
  %s1 = inlined_call_operand.hbm [shape: f32[128,256], index: 1, kind: input, shape index: {}]
  %s2 = inlined_call_operand.vmem [shape: f32[1,256], index: 2, kind: input, shape index: {}]
  %s3 = inlined_call_operand.hbm [shape: f32[256,128], index: 3, kind: input, shape index: {}]
  %s4 = inlined_call_operand.vmem [shape: f32[1,128], index: 4, kind: input, shape index: {}]
  %s5 = inlined_call_operand.hbm [shape: f32[16,128], index: 5, kind: output, shape index: {}]
  %s6 = sld [smem:[#allocation0]]
  $region42: #{tpu_custom_call.1} parent=0
    _
  %s8 = ssub.s32 1, %s6
  %s9 = scalar_select 0, %s8, %s6
  $region1: #{tpu_custom_call.1} parent=0
    #allocation2 [shape = 'u8[8192]{0}', space=vmem, size = 0x2000, scoped, tag = 'input window, operand 0, single buffered']
    #allocation3 [shape = 's32[1]{0}', space=sflag, size = 0x4, scoped, tag = 'scoped memory for tpu_custom_call.1']
    #allocation4 [shape = 's32[1]{0}', space=sflag, size = 0x4, scoped, tag = 'scoped memory for tpu_custom_call.1']
    #allocation5 [shape = 'u8[131072]{0}', space=vmem, size = 0x20000, scoped, tag = 'input window, operand 1, single buffered']
    #allocation6 [shape = 's32[1]{0}', space=sflag, size = 0x4, scoped, tag = 'scoped memory for tpu_custom_call.1']
    #allocation7 [shape = 'u8[131072]{0}', space=vmem, size = 0x20000, scoped, tag = 'input window, operand 3, single buffered']
    #allocation8 [shape = 'u8[8192]{0}', space=vmem, size = 0x2000, scoped, tag = 'output window, operand 0, single buffered']
    %10 = vsyncpa [#allocation3], 0
    %11 = vsyncpa [#allocation6], 0
    %12 = vsyncpa [#allocation4], 0
    // Predicated region
    $region2: #{tpu_custom_call.1} parent=1 // pred_check
      _
    $region3: #{tpu_custom_call.1} parent=1 // pred_check_branch
      %14 = sbr.rel (0) target = $region5
    $region4: #{tpu_custom_call.1} parent=1 // pred_region
      %s16 = ssub.s32 256, 256
      %17 = vsyncadd [#allocation3], %s16
      %s18 = sshll.u32 [#allocation2], 4
      %s19 = int_to_ptr.vmem [resolvable:$true] %s18
      %24 = dma.hbm_to_vmem [thread:$0]  %s0, 256, %s19, [#allocation3], 128, 128, 8
    $region5: #{tpu_custom_call.1} parent=1 // pred_fallthru
      _
    // Predicated region
    $region6: #{tpu_custom_call.1} parent=1 // pred_check
      _
    $region7: #{tpu_custom_call.1} parent=1 // pred_check_branch
      %26 = sbr.rel (0) target = $region9
    $region8: #{tpu_custom_call.1} parent=1 // pred_region
      %s28 = ssub.s32 4096, 4096
      %29 = vsyncadd [#allocation6], %s28
      %s30 = sshll.u32 [#allocation5], 4
      %s31 = int_to_ptr.vmem [resolvable:$true] %s30
      %36 = dma.hbm_to_vmem [thread:$0]  %s1, 4096, %s31, [#allocation6], 256, 256, 16
    $region9: #{tpu_custom_call.1} parent=1 // pred_fallthru
      _
    // Predicated region
    $region10: #{tpu_custom_call.1} parent=1 // pred_check
      _
    $region11: #{tpu_custom_call.1} parent=1 // pred_check_branch
      %38 = sbr.rel (0) target = $region13
    $region12: #{tpu_custom_call.1} parent=1 // pred_region
      _
    $region13: #{tpu_custom_call.1} parent=1 // pred_fallthru
      _
    // Predicated region
    $region14: #{tpu_custom_call.1} parent=1 // pred_check
      _
    $region15: #{tpu_custom_call.1} parent=1 // pred_check_branch
      %40 = sbr.rel (0) target = $region17
    $region16: #{tpu_custom_call.1} parent=1 // pred_region
      %s42 = ssub.s32 4096, 4096
      %43 = vsyncadd [#allocation6], %s42
      %s44 = sshll.u32 [#allocation7], 4
      %s45 = int_to_ptr.vmem [resolvable:$true] %s44
      %50 = dma.hbm_to_vmem [thread:$0]  %s3, 4096, %s45, [#allocation6], 128, 128, 8
    $region17: #{tpu_custom_call.1} parent=1 // pred_fallthru
      _
    // Predicated region
    $region18: #{tpu_custom_call.1} parent=1 // pred_check
      _
    $region19: #{tpu_custom_call.1} parent=1 // pred_check_branch
      %52 = sbr.rel (0) target = $region21
    $region20: #{tpu_custom_call.1} parent=1 // pred_region
      _
    $region21: #{tpu_custom_call.1} parent=1 // pred_fallthru
      _
    // Predicated region
    $region22: #{tpu_custom_call.1} parent=1 // pred_check
      _
    $region23: #{tpu_custom_call.1} parent=1 // pred_check_branch
      %54 = sbr.rel (0) target = $region25
    $region24: #{tpu_custom_call.1} parent=1 // pred_region
      %55 = dma.done [#allocation3], 256
    $region25: #{tpu_custom_call.1} parent=1 // pred_fallthru
      _
    // Predicated region
    $region26: #{tpu_custom_call.1} parent=1 // pred_check
      _
    $region27: #{tpu_custom_call.1} parent=1 // pred_check_branch
      %57 = sbr.rel (0) target = $region29
    $region28: #{tpu_custom_call.1} parent=1 // pred_region
      %58 = dma.done [#allocation6], 4096
    $region29: #{tpu_custom_call.1} parent=1 // pred_fallthru
      _
    // Predicated region
    $region30: #{tpu_custom_call.1} parent=1 // pred_check
      _
    $region31: #{tpu_custom_call.1} parent=1 // pred_check_branch
      %60 = sbr.rel (0) target = $region33
    $region32: #{tpu_custom_call.1} parent=1 // pred_region
      %61 = dma.done [#allocation6], 4096
    $region33: #{tpu_custom_call.1} parent=1 // pred_fallthru
      _
    %v62 = vld [vmem:[#allocation2] sm:$0xff]
    %v63 = vld [vmem:[#allocation2 + $0x8] sm:$0xff]
    %v64 = vld [vmem:[#allocation5] sm:$0xff]
    %v65 = vld [vmem:[#allocation5 + $0x8] sm:$0xff]
    %v66 = vld [vmem:[#allocation5 + $0x10] sm:$0xff]
    %v67 = vld [vmem:[#allocation5 + $0x18] sm:$0xff]
    %v68 = vld [vmem:[#allocation5 + $0x20] sm:$0xff]
    %v69 = vld [vmem:[#allocation5 + $0x28] sm:$0xff]
    %v70 = vld [vmem:[#allocation5 + $0x30] sm:$0xff]
    %v71 = vld [vmem:[#allocation5 + $0x38] sm:$0xff]
    %v72 = vld [vmem:[#allocation5 + $0x40] sm:$0xff]
    %v73 = vld [vmem:[#allocation5 + $0x48] sm:$0xff]
    %v74 = vld [vmem:[#allocation5 + $0x50] sm:$0xff]
    %v75 = vld [vmem:[#allocation5 + $0x58] sm:$0xff]
    %v76 = vld [vmem:[#allocation5 + $0x60] sm:$0xff]
    %v77 = vld [vmem:[#allocation5 + $0x68] sm:$0xff]
    %v78 = vld [vmem:[#allocation5 + $0x70] sm:$0xff]
    %v79 = vld [vmem:[#allocation5 + $0x78] sm:$0xff]
    %v80 = vld [vmem:[#allocation5 + $0x80] sm:$0xff]
    %v81 = vld [vmem:[#allocation5 + $0x88] sm:$0xff]
    %v82 = vld [vmem:[#allocation5 + $0x90] sm:$0xff]
    %v83 = vld [vmem:[#allocation5 + $0x98] sm:$0xff]
    %v84 = vld [vmem:[#allocation5 + $0xa0] sm:$0xff]
    %v85 = vld [vmem:[#allocation5 + $0xa8] sm:$0xff]
    %v86 = vld [vmem:[#allocation5 + $0xb0] sm:$0xff]
    %v87 = vld [vmem:[#allocation5 + $0xb8] sm:$0xff]
    %v88 = vld [vmem:[#allocation5 + $0xc0] sm:$0xff]
    %v89 = vld [vmem:[#allocation5 + $0xc8] sm:$0xff]
    %v90 = vld [vmem:[#allocation5 + $0xd0] sm:$0xff]
    %v91 = vld [vmem:[#allocation5 + $0xd8] sm:$0xff]
    %v92 = vld [vmem:[#allocation5 + $0xe0] sm:$0xff]
    %v93 = vld [vmem:[#allocation5 + $0xe8] sm:$0xff]
    %v94 = vld [vmem:[#allocation5 + $0xf0] sm:$0xff]
    %v95 = vld [vmem:[#allocation5 + $0xf8] sm:$0xff]
    %v96 = vld [vmem:[%s2] sm:$0x3]
    %v98 = vlaneseq
    %v99 = vshrl.u32 %v98, 7
    %v100 = vsub.s32 0, %v99
    %v101 = vrot.slane %v96, %v100
    %v102 = vlaneseq
    %v103 = vshrl.u32 %v102, 7
    %v104 = vsub.s32 1, %v103
    %v105 = vrot.slane %v96, %v104
    %108 = vmatprep.subr.mxu0 %v95
    %109 = vmatpush1.msra.mxu0 %v94
    %110 = vmatprep.subr.mxu0 %v93
    %111 = vmatpush1.msra.mxu0 %v92
    %112 = vmatprep.subr.mxu0 %v91
    %113 = vmatpush1.msra.mxu0 %v90
    %114 = vmatprep.subr.mxu0 %v89
    %115 = vmatpush1.msra.mxu0 %v88
    %116 = vmatprep.subr.mxu0 %v87
    %117 = vmatpush1.msra.mxu0 %v86
    %118 = vmatprep.subr.mxu0 %v85
    %119 = vmatpush1.msra.mxu0 %v84
    %120 = vmatprep.subr.mxu0 %v83
    %121 = vmatpush1.msra.mxu0 %v82
    %122 = vmatprep.subr.mxu0 %v81
    %123 = vmatpush1.msra.mxu0 %v80
    %124 = vmatprep.subr.mxu0 %v79
    %125 = vmatpush1.msra.mxu0 %v78
    %126 = vmatprep.subr.mxu0 %v77
    %127 = vmatpush1.msra.mxu0 %v76
    %128 = vmatprep.subr.mxu0 %v75
    %129 = vmatpush1.msra.mxu0 %v74
    %130 = vmatprep.subr.mxu0 %v73
    %131 = vmatpush1.msra.mxu0 %v72
    %132 = vmatprep.subr.mxu0 %v71
    %133 = vmatpush1.msra.mxu0 %v70
    %134 = vmatprep.subr.mxu0 %v69
    %135 = vmatpush1.msra.mxu0 %v68
    %136 = vmatprep.subr.mxu0 %v67
    %137 = vmatpush1.msra.mxu0 %v66
    %138 = vmatprep.subr.mxu0 %v65
    %139 = vmatpush1.msra.mxu0 %v64
    %140 = vmatprep.subr.mxu0 0.0
    %141 = vmatpush2.msra.mxu0 0.0
    %142 = vmatprep.subr.mxu0 0.0
    %143 = vmatpush2.msra.mxu0 0.0
    %144 = vmatprep.subr.mxu0 0.0
    %145 = vmatpush2.msra.mxu0 0.0
    %146 = vmatprep.subr.mxu0 0.0
    %147 = vmatpush2.msra.mxu0 0.0
    %148 = vmatprep.subr.mxu0 0.0
    %149 = vmatpush2.msra.mxu0 0.0
    %150 = vmatprep.subr.mxu0 0.0
    %151 = vmatpush2.msra.mxu0 0.0
    %152 = vmatprep.subr.mxu0 0.0
    %153 = vmatpush2.msra.mxu0 0.0
    %154 = vmatprep.subr.mxu0 0.0
    %155 = vmatpush2.msra.mxu0 0.0
    %156 = vmatprep.subr.mxu0 0.0
    %157 = vmatpush2.msra.mxu0 0.0
    %158 = vmatprep.subr.mxu0 0.0
    %159 = vmatpush2.msra.mxu0 0.0
    %160 = vmatprep.subr.mxu0 0.0
    %161 = vmatpush2.msra.mxu0 0.0
    %162 = vmatprep.subr.mxu0 0.0
    %163 = vmatpush2.msra.mxu0 0.0
    %164 = vmatprep.subr.mxu0 0.0
    %165 = vmatpush2.msra.mxu0 0.0
    %166 = vmatprep.subr.mxu0 0.0
    %167 = vmatpush2.msra.mxu0 0.0
    %168 = vmatprep.subr.mxu0 0.0
    %169 = vmatpush2.msra.mxu0 0.0
    %170 = vmatprep.subr.mxu0 0.0
    %171 = vmatpush2.msra.mxu0 0.0
    %172 = vmatprep.mubr.f32.mxu0 0.0
    %173 = vmatmul.mubr.f32.gmra.mxu0 %v62
    %v174 = vpop.f32.mrf.mxu0
    %v175 = vadd.f32 %v101, %v174
    %v176 = vpop.f32.mrf.mxu0
    %v177 = vadd.f32 %v105, %v176
    %178 = vmatprep.mubr.f32.mxu0 0.0
    %179 = vmatmul.mubr.f32.gmra.mxu0 %v63
    %v180 = vpop.f32.mrf.mxu0
    %v181 = vadd.f32 %v101, %v180
    %v182 = vpop.f32.mrf.mxu0
    %v183 = vadd.f32 %v105, %v182
    %184 = vdwg.mxu0
    %v185 = vmul.f32 %v175, 0.5
    %v186 = vmul.f32 %v177, 0.5
    %v187 = vmul.f32 %v181, 0.5
    %v188 = vmul.f32 %v183, 0.5
    %v189 = vmul.f32 %v175, 0.70710677
    %v190 = vmul.f32 %v177, 0.70710677
    %v191 = vmul.f32 %v181, 0.70710677
    %v192 = vmul.f32 %v183, 0.70710677
    %v193 = verf.f32.pop %v189
    %v194 = verf.f32.pop %v190
    %v195 = verf.f32.pop %v191
    %v196 = verf.f32.pop %v192
    %v197 = vadd.f32 %v193, 1.0
    %v198 = vadd.f32 %v194, 1.0
    %v199 = vadd.f32 %v195, 1.0
    %v200 = vadd.f32 %v196, 1.0
    %v201 = vmul.f32 %v185, %v197
    %v202 = vmul.f32 %v186, %v198
    %v203 = vmul.f32 %v187, %v199
    %v204 = vmul.f32 %v188, %v200
    %v205 = vld [vmem:[#allocation7] sm:$0xff]
    %v206 = vld [vmem:[#allocation7 + $0x8] sm:$0xff]
    %v207 = vld [vmem:[#allocation7 + $0x10] sm:$0xff]
    %v208 = vld [vmem:[#allocation7 + $0x18] sm:$0xff]
    %v209 = vld [vmem:[#allocation7 + $0x20] sm:$0xff]
    %v210 = vld [vmem:[#allocation7 + $0x28] sm:$0xff]
    %v211 = vld [vmem:[#allocation7 + $0x30] sm:$0xff]
    %v212 = vld [vmem:[#allocation7 + $0x38] sm:$0xff]
    %v213 = vld [vmem:[#allocation7 + $0x40] sm:$0xff]
    %v214 = vld [vmem:[#allocation7 + $0x48] sm:$0xff]
    %v215 = vld [vmem:[#allocation7 + $0x50] sm:$0xff]
    %v216 = vld [vmem:[#allocation7 + $0x58] sm:$0xff]
    %v217 = vld [vmem:[#allocation7 + $0x60] sm:$0xff]
    %v218 = vld [vmem:[#allocation7 + $0x68] sm:$0xff]
    %v219 = vld [vmem:[#allocation7 + $0x70] sm:$0xff]
    %v220 = vld [vmem:[#allocation7 + $0x78] sm:$0xff]
    %v221 = vld [vmem:[#allocation7 + $0x80] sm:$0xff]
    %v222 = vld [vmem:[#allocation7 + $0x88] sm:$0xff]
    %v223 = vld [vmem:[#allocation7 + $0x90] sm:$0xff]
    %v224 = vld [vmem:[#allocation7 + $0x98] sm:$0xff]
    %v225 = vld [vmem:[#allocation7 + $0xa0] sm:$0xff]
    %v226 = vld [vmem:[#allocation7 + $0xa8] sm:$0xff]
    %v227 = vld [vmem:[#allocation7 + $0xb0] sm:$0xff]
    %v228 = vld [vmem:[#allocation7 + $0xb8] sm:$0xff]
    %v229 = vld [vmem:[#allocation7 + $0xc0] sm:$0xff]
    %v230 = vld [vmem:[#allocation7 + $0xc8] sm:$0xff]
    %v231 = vld [vmem:[#allocation7 + $0xd0] sm:$0xff]
    %v232 = vld [vmem:[#allocation7 + $0xd8] sm:$0xff]
    %v233 = vld [vmem:[#allocation7 + $0xe0] sm:$0xff]
    %v234 = vld [vmem:[#allocation7 + $0xe8] sm:$0xff]
    %v235 = vld [vmem:[#allocation7 + $0xf0] sm:$0xff]
    %v236 = vld [vmem:[#allocation7 + $0xf8] sm:$0xff]
    %v237 = vld [vmem:[%s4] sm:$0x1]
    %v239 = vlaneseq
    %v240 = vshrl.u32 %v239, 7
    %v241 = vsub.s32 0, %v240
    %v242 = vrot.slane %v237, %v241
    %244 = vmatprep.subr.mxu0 0.0
    %245 = vmatpush1.msra.mxu0 %v220
    %246 = vmatprep.subr.mxu0 0.0
    %247 = vmatpush1.msra.mxu0 %v219
    %248 = vmatprep.subr.mxu0 0.0
    %249 = vmatpush1.msra.mxu0 %v218
    %250 = vmatprep.subr.mxu0 0.0
    %251 = vmatpush1.msra.mxu0 %v217
    %252 = vmatprep.subr.mxu0 0.0
    %253 = vmatpush1.msra.mxu0 %v216
    %254 = vmatprep.subr.mxu0 0.0
    %255 = vmatpush1.msra.mxu0 %v215
    %256 = vmatprep.subr.mxu0 0.0
    %257 = vmatpush1.msra.mxu0 %v214
    %258 = vmatprep.subr.mxu0 0.0
    %259 = vmatpush1.msra.mxu0 %v213
    %260 = vmatprep.subr.mxu0 0.0
    %261 = vmatpush1.msra.mxu0 %v212
    %262 = vmatprep.subr.mxu0 0.0
    %263 = vmatpush1.msra.mxu0 %v211
    %264 = vmatprep.subr.mxu0 0.0
    %265 = vmatpush1.msra.mxu0 %v210
    %266 = vmatprep.subr.mxu0 0.0
    %267 = vmatpush1.msra.mxu0 %v209
    %268 = vmatprep.subr.mxu0 0.0
    %269 = vmatpush1.msra.mxu0 %v208
    %270 = vmatprep.subr.mxu0 0.0
    %271 = vmatpush1.msra.mxu0 %v207
    %272 = vmatprep.subr.mxu0 0.0
    %273 = vmatpush1.msra.mxu0 %v206
    %274 = vmatprep.subr.mxu0 0.0
    %275 = vmatpush1.msra.mxu0 %v205
    %276 = vmatprep.subr.mxu0 0.0
    %277 = vmatpush2.msra.mxu0 %v236
    %278 = vmatprep.subr.mxu0 0.0
    %279 = vmatpush2.msra.mxu0 %v235
    %280 = vmatprep.subr.mxu0 0.0
    %281 = vmatpush2.msra.mxu0 %v234
    %282 = vmatprep.subr.mxu0 0.0
    %283 = vmatpush2.msra.mxu0 %v233
    %284 = vmatprep.subr.mxu0 0.0
    %285 = vmatpush2.msra.mxu0 %v232
    %286 = vmatprep.subr.mxu0 0.0
    %287 = vmatpush2.msra.mxu0 %v231
    %288 = vmatprep.subr.mxu0 0.0
    %289 = vmatpush2.msra.mxu0 %v230
    %290 = vmatprep.subr.mxu0 0.0
    %291 = vmatpush2.msra.mxu0 %v229
    %292 = vmatprep.subr.mxu0 0.0
    %293 = vmatpush2.msra.mxu0 %v228
    %294 = vmatprep.subr.mxu0 0.0
    %295 = vmatpush2.msra.mxu0 %v227
    %296 = vmatprep.subr.mxu0 0.0
    %297 = vmatpush2.msra.mxu0 %v226
    %298 = vmatprep.subr.mxu0 0.0
    %299 = vmatpush2.msra.mxu0 %v225
    %300 = vmatprep.subr.mxu0 0.0
    %301 = vmatpush2.msra.mxu0 %v224
    %302 = vmatprep.subr.mxu0 0.0
    %303 = vmatpush2.msra.mxu0 %v223
    %304 = vmatprep.subr.mxu0 0.0
    %305 = vmatpush2.msra.mxu0 %v222
    %306 = vmatprep.subr.mxu0 0.0
    %307 = vmatpush2.msra.mxu0 %v221
    %308 = vmatprep.mubr.f32.mxu0 %v202
    %309 = vmatmul.mubr.f32.gmra.mxu0 %v201
    %v310 = vpop.f32.mrf.mxu0
    %v311 = vadd.f32 %v242, %v310
    %v312 = vpop.f32.mrf.mxu0
    %313 = vmatprep.mubr.f32.mxu0 %v204
    %314 = vmatmul.mubr.f32.gmra.mxu0 %v203
    %v315 = vpop.f32.mrf.mxu0
    %v316 = vadd.f32 %v242, %v315
    %v317 = vpop.f32.mrf.mxu0
    %318 = vdwg.mxu0
    %319 = vst [vmem:[#allocation8] sm:$0xff] %v311
    %320 = vst [vmem:[#allocation8 + $0x8] sm:$0xff] %v316
    // Predicated region
    $region34: #{tpu_custom_call.1} parent=1 // pred_check
      _
    $region35: #{tpu_custom_call.1} parent=1 // pred_check_branch
      %322 = sbr.rel (0) target = $region37
    $region36: #{tpu_custom_call.1} parent=1 // pred_region
      %s324 = ssub.s32 256, 256
      %325 = vsyncadd [#allocation4], %s324
      %s326 = sshll.u32 [#allocation8], 4
      %s327 = int_to_ptr.vmem [resolvable:$true] %s326
      %332 = dma.vmem_to_hbm [thread:$0]  %s327, 256, %s5, [#allocation4], 128, 128, 8
    $region37: #{tpu_custom_call.1} parent=1 // pred_fallthru
      _
    // Predicated region
    $region38: #{tpu_custom_call.1} parent=1 // pred_check
      _
    $region39: #{tpu_custom_call.1} parent=1 // pred_check_branch
      %334 = sbr.rel (0) target = $region41
    $region40: #{tpu_custom_call.1} parent=1 // pred_region
      %335 = dma.done [#allocation4], 256
    $region41: #{tpu_custom_call.1} parent=1 // pred_fallthru
      _
    %336 = vsyncpa [#allocation3], 1
    %337 = vsyncpa [#allocation6], 1
    %338 = vsyncpa [#allocation4], 1

</llo_original>
